<compile_context>
chip_gen: v5e
topology: v5e:2x2
jax: 0.10.0
libtpu: 0.0.40
codegen_flags: <defaults>
</compile_context>

<pallas_src>
import jax
import jax.numpy as jnp
from jax.experimental import pallas as pl
from jax.experimental.pallas import tpu as pltpu


def _round_up(x, m):
    return (x + m - 1) // m * m


# Live-VMEM budget used for tile sizing (conservative for v7x's 64 MiB physical).
_VMEM_BUDGET = 36 * 1024 * 1024
_VMEM_LIMIT = 48 * 1024 * 1024


def _vmem_bytes(tile_b, tile_k, E_p, H_p, K_p):
    x_buf = 2 * tile_b * tile_k * 4          # f32 x tiles, double-buffered
    w1_buf = 2 * tile_k * E_p * 2            # bf16 W1 tiles, double-buffered
    out_buf = 2 * tile_b * K_p * 4           # f32 output tiles
    acc = tile_b * E_p * 4                   # f32 accumulator scratch
    resident = 2 * (E_p * H_p * 2 + H_p * K_p * 2 + (E_p + H_p + K_p) * 4)
    return x_buf + w1_buf + out_buf + acc + resident


def _pick_tiles(B, V, E_p, H_p, K_p, tile_b, tile_k, min_batch_tiles):
    if tile_k is None:
        cap_k = 2048
        nk = max(pl.cdiv(max(V, 1), cap_k), 1)
        tile_k = _round_up(pl.cdiv(V, nk), 128)
    else:
        tile_k = _round_up(tile_k, 128)
    if tile_b is None:
        cap_b = 512
        nb = max(pl.cdiv(max(B, 1), cap_b), min_batch_tiles, 1)
        tile_b = _round_up(pl.cdiv(B, nb), 16)
    else:
        tile_b = _round_up(tile_b, 16)
    # Shrink to the VMEM budget if the model dims are unusually large.
    while _vmem_bytes(tile_b, tile_k, E_p, H_p, K_p) > _VMEM_BUDGET and tile_k > 512:
        tile_k = _round_up(max(tile_k // 2, 128), 128)
    while _vmem_bytes(tile_b, tile_k, E_p, H_p, K_p) > _VMEM_BUDGET and tile_b > 16:
        tile_b = _round_up(max(tile_b // 2, 16), 16)
    return tile_b, tile_k


def _make_encoder_kernel(ragged_k, tile_k, v_last):
    def encoder_kernel(x_ref, w1_ref, b1_ref, w2_ref, b2_ref, w3_ref, b3_ref,
                       out_ref, acc_ref):
        k = pl.program_id(1)

        @pl.when(k == 0)
        def _init():
            acc_ref[...] = jnp.zeros_like(acc_ref)

        x_tile = x_ref[...]                      # f32, straight from HBM
        if ragged_k:
            # Zero the columns of the last (partial) K tile that lie beyond V so
            # the OOB-read garbage never reaches the MXU (W1's pad rows are 0).
            limit = jnp.where(k == pl.num_programs(1) - 1,
                              jnp.int32(v_last), jnp.int32(tile_k))
            col = jax.lax.broadcasted_iota(jnp.int32, x_tile.shape, 1)
            x_tile = jnp.where(col < limit, x_tile, jnp.float32(0.0))

        # Stream a [TB, TK] x tile against a [TK, E] W1 tile; f32 accumulation.
        acc_ref[...] += jnp.dot(x_tile.astype(w1_ref.dtype), w1_ref[...],
                                preferred_element_type=jnp.float32)

        @pl.when(k == pl.num_programs(1) - 1)
        def _finalize():
            # embedding_layer bias + ReLU (f32 elementwise)
            h1 = jnp.maximum(acc_ref[...] + b1_ref[...], 0.0)

            # fc + ReLU
            h2 = jnp.dot(h1.astype(w2_ref.dtype), w2_ref[...],
                         preferred_element_type=jnp.float32) + b2_ref[...]
            h2 = jnp.maximum(h2, 0.0)

            # alpha_layer with BatchNorm(eval) pre-folded into W3'/b3'
            a = jnp.dot(h2.astype(w3_ref.dtype), w3_ref[...],
                        preferred_element_type=jnp.float32) + b3_ref[...]

            # softplus (stable, matches F.softplus) then clamp at 1e-5
            sp = jnp.logaddexp(a, jnp.float32(0.0))
            out_ref[...] = jnp.maximum(sp, jnp.float32(1e-5)).astype(out_ref.dtype)

    return encoder_kernel


def encoder_forward(x, params, *, weight_dtype=jnp.bfloat16,
                    tile_b=None, tile_k=None, min_batch_tiles=1):
    """x: [B, vocab_size] float32 -> [B, num_topics] float32.

    min_batch_tiles: set to 2 on v7x so the 'parallel' batch axis feeds both
    TensorCores (costs one extra W1 read).
    """
    w1, b1, w2, b2, w3, b3, bn_scale, bn_shift = params
    B, V = x.shape
    E = w1.shape[1]
    H = w2.shape[1]
    K = w3.shape[1]

    # Fold BatchNorm1d (eval) into the alpha layer (in f32, then cast).
    w3_folded = (w3 * bn_scale)
    b3_folded = (b3 * bn_scale + bn_shift).astype(jnp.float32)

    # Lane-dense padding: feature dims to multiples of 128.
    E_p = _round_up(E, 128)
    H_p = _round_up(H, 128)
    K_p = _round_up(K, 128)

    tile_b, tile_k = _pick_tiles(B, V, E_p, H_p, K_p, tile_b, tile_k,
                                 min_batch_tiles)

    nb = pl.cdiv(B, tile_b)
    nk = pl.cdiv(V, tile_k)
    V_pk = nk * tile_k                # W1 rows padded to a whole number of K tiles
    ragged_k = (V_pk != V)
    v_last = V - (nk - 1) * tile_k    # valid columns in the last K tile

    def pad2(a, rows, cols):
        if a.shape[0] == rows and a.shape[1] == cols:
            return a
        return jnp.pad(a, ((0, rows - a.shape[0]), (0, cols - a.shape[1])))

    # Weights are padded/cast once (cheap, parameter-sized).  x is streamed
    # unpadded and uncast: ragged K columns are masked in-kernel, ragged batch
    # rows only pollute output rows that get sliced off below.
    w1_p = pad2(w1.astype(weight_dtype), V_pk, E_p)
    w2_p = pad2(w2.astype(weight_dtype), E_p, H_p)
    w3_p = pad2(w3_folded.astype(weight_dtype), H_p, K_p)
    b1_p = pad2(b1.astype(jnp.float32), 1, E_p)
    b2_p = pad2(b2.astype(jnp.float32), 1, H_p)
    b3_p = pad2(b3_folded, 1, K_p)

    kernel = _make_encoder_kernel(ragged_k, tile_k, v_last)

    out = pl.pallas_call(
        kernel,
        out_shape=jax.ShapeDtypeStruct((nb * tile_b, K_p), jnp.float32),
        grid_spec=pltpu.PrefetchScalarGridSpec(
            num_scalar_prefetch=0,
            grid=(nb, nk),
            in_specs=[
                pl.BlockSpec((tile_b, tile_k), lambda i, k: (i, k)),   # x tile (f32)
                pl.BlockSpec((tile_k, E_p), lambda i, k: (k, 0)),      # W1 tile
                pl.BlockSpec((1, E_p), lambda i, k: (0, 0)),           # b1 (resident)
                pl.BlockSpec((E_p, H_p), lambda i, k: (0, 0)),         # W2 (resident)
                pl.BlockSpec((1, H_p), lambda i, k: (0, 0)),           # b2 (resident)
                pl.BlockSpec((H_p, K_p), lambda i, k: (0, 0)),         # W3' (resident)
                pl.BlockSpec((1, K_p), lambda i, k: (0, 0)),           # b3' (resident)
            ],
            out_specs=pl.BlockSpec((tile_b, K_p), lambda i, k: (i, 0)),
            scratch_shapes=[pltpu.VMEM((tile_b, E_p), jnp.float32)],
        ),
        compiler_params=pltpu.CompilerParams(
            dimension_semantics=("parallel", "arbitrary"),
            vmem_limit_bytes=_VMEM_LIMIT,
        ),
    )(x, w1_p, b1_p, w2_p, b2_p, w3_p, b3_p)

    return out[:B, :K]


def encoder_reference(x, params, weight_dtype=jnp.bfloat16):
    """Pure-JAX reference using the same (quantized) weights as the kernel."""
    w1, b1, w2, b2, w3, b3, bn_scale, bn_shift = params
    w3f = (w3 * bn_scale).astype(weight_dtype)
    b3f = (b3 * bn_scale + bn_shift).astype(jnp.float32)
    xd = x.astype(weight_dtype)
    h1 = jnp.maximum(jnp.dot(xd, w1.astype(weight_dtype),
                             preferred_element_type=jnp.float32) + b1, 0.0)
    h2 = jnp.maximum(jnp.dot(h1.astype(weight_dtype), w2.astype(weight_dtype),
                             preferred_element_type=jnp.float32) + b2, 0.0)
    a = jnp.dot(h2.astype(weight_dtype), w3f,
                preferred_element_type=jnp.float32) + b3f
    return jnp.maximum(jnp.logaddexp(a, 0.0), 1e-5)


def init_params(key, vocab_size, num_topics, embeddings_dim, hidden_dim):
    """Deterministic synthetic parameters (PyTorch-Linear-like uniform fan-in init)."""
    ks = jax.random.split(key, 6)

    def lin(kw, kb, fan_in, fan_out):
        bound = 1.0 / jnp.sqrt(jnp.float32(fan_in))
        w = jax.random.uniform(kw, (fan_in, fan_out), jnp.float32, -bound, bound)
        b = jax.random.uniform(kb, (1, fan_out), jnp.float32, -bound, bound)
        return w, b

    w1, b1 = lin(ks[0], ks[1], vocab_size, embeddings_dim)      # embedding_layer
    w2, b2 = lin(ks[2], ks[3], embeddings_dim, hidden_dim)      # fc
    w3, b3 = lin(ks[4], ks[5], hidden_dim, num_topics)          # alpha_layer

    # BatchNorm1d(num_topics, eps=1e-3): gamma frozen to ones, beta zeros,
    # running_mean=0, running_var=1 at init -> eval-mode fold:
    eps = 1e-3
    gamma = jnp.ones((1, num_topics), jnp.float32)
    beta = jnp.zeros((1, num_topics), jnp.float32)
    running_mean = jnp.zeros((1, num_topics), jnp.float32)
    running_var = jnp.ones((1, num_topics), jnp.float32)
    inv_std = 1.0 / jnp.sqrt(running_var + eps)
    bn_scale = gamma * inv_std
    bn_shift = beta - running_mean * bn_scale

    return (w1, b1, w2, b2, w3, b3, bn_scale, bn_shift)


if __name__ == "__main__":
    # Small shapes consistent with the module's forward.
    batch = 24
    vocab_size = 384
    embeddings_dim = 64
    hidden_dim = 32
    num_topics = 16

    key = jax.random.PRNGKey(0)
    k_x, k_p = jax.random.split(key)

    # Bag-of-words-like non-negative input counts.
    x = jax.random.uniform(k_x, (batch, vocab_size), jnp.float32, 0.0, 2.0)
    params = init_params(k_p, vocab_size, num_topics, embeddings_dim, hidden_dim)

    # Run 1: heuristic tiling (single block at these toy shapes, W1 read once).
    out = jax.block_until_ready(encoder_forward(x, params))
    # Run 2: multi-tile grid (2 batch tiles x 3 vocab tiles, ragged batch tail)
    # to exercise the accumulator / pipelined path with OOB batch rows.
    out_multi = jax.block_until_ready(
        encoder_forward(x, params, tile_b=16, tile_k=128))
    # Run 3: vocab tile that does NOT divide V -> exercises the in-kernel mask
    # of the ragged last K tile.
    out_ragged = jax.block_until_ready(
        encoder_forward(x, params, tile_b=16, tile_k=256))

    ref = jax.block_until_ready(encoder_reference(x, params))

    assert out.shape == (batch, num_topics)
    assert out.dtype == jnp.float32
    assert bool(jnp.all(out >= 1e-5))
    assert bool(jnp.allclose(out, ref, rtol=2e-3, atol=2e-3))
    assert bool(jnp.allclose(out_multi, ref, rtol=2e-3, atol=2e-3))
    assert bool(jnp.allclose(out_ragged, ref, rtol=2e-3, atol=2e-3))

    print("KERNEL_OK")
</pallas_src>

<mosaic_0001>
module attributes {stable_mosaic.version = 11 : i64} {
  func.func @encoder_kernel(%arg0: i32, %arg1: i32, %arg2: memref<32x384xf32, #tpu.memory_space<vmem>>, %arg3: memref<384x128xbf16, #tpu.memory_space<vmem>>, %arg4: memref<1x128xf32, #tpu.memory_space<vmem>>, %arg5: memref<128x128xbf16, #tpu.memory_space<vmem>>, %arg6: memref<1x128xf32, #tpu.memory_space<vmem>>, %arg7: memref<128x128xbf16, #tpu.memory_space<vmem>>, %arg8: memref<1x128xf32, #tpu.memory_space<vmem>>, %arg9: memref<32x128xf32, #tpu.memory_space<vmem>>, %arg10: memref<32x128xf32, #tpu.memory_space<vmem>>) attributes {dimension_semantics = [#tpu.dimension_semantics<parallel>, #tpu.dimension_semantics<arbitrary>], iteration_bounds = array<i64: 1, 1>, scalar_prefetch = 0 : i64, scratch_operands = 1 : i64, tpu.core_type = #tpu.core_type<tc>, window_params = [{transform_indices = @transform_0, window_bounds = array<i64: 32, 384>}, {transform_indices = @transform_1, window_bounds = array<i64: 384, 128>}, {pipeline_mode = #tpu.pipeline_mode<synchronous>, transform_indices = @transform_2, window_bounds = array<i64: 1, 128>}, {pipeline_mode = #tpu.pipeline_mode<synchronous>, transform_indices = @transform_3, window_bounds = array<i64: 128, 128>}, {pipeline_mode = #tpu.pipeline_mode<synchronous>, transform_indices = @transform_4, window_bounds = array<i64: 1, 128>}, {pipeline_mode = #tpu.pipeline_mode<synchronous>, transform_indices = @transform_5, window_bounds = array<i64: 128, 128>}, {pipeline_mode = #tpu.pipeline_mode<synchronous>, transform_indices = @transform_6, window_bounds = array<i64: 1, 128>}, {transform_indices = @transform_7, window_bounds = array<i64: 32, 128>}]} {
    %c0_i32 = arith.constant 0 : i32
    %0 = arith.cmpi eq, %arg1, %c0_i32 : i32
    %1 = arith.extui %0 : i1 to i32
    %c0_i32_0 = arith.constant 0 : i32
    %2 = arith.cmpi ne, %1, %c0_i32_0 : i32
    scf.if %2 {
      %cst_10 = arith.constant 0.000000e+00 : f32
      %13 = vector.broadcast %cst_10 : f32 to vector<32x128xf32>
      %c0_11 = arith.constant 0 : index
      %c0_12 = arith.constant 0 : index
      %14 = vector.load %arg10[%c0_11, %c0_12] : memref<32x128xf32, #tpu.memory_space<vmem>>, vector<32x128xf32>
      tpu.vector_store %arg10[%c0_11, %c0_12], %13 {strides = array<i32>} : memref<32x128xf32, #tpu.memory_space<vmem>>, vector<32x128xf32>,
    } else {
    }
    %c0 = arith.constant 0 : index
    %c0_1 = arith.constant 0 : index
    %3 = vector.load %arg2[%c0, %c0_1] : memref<32x384xf32, #tpu.memory_space<vmem>>, vector<32x384xf32>
    %c0_2 = arith.constant 0 : index
    %c0_3 = arith.constant 0 : index
    %4 = vector.load %arg10[%c0_2, %c0_3] : memref<32x128xf32, #tpu.memory_space<vmem>>, vector<32x128xf32>
    %5 = arith.truncf %3 : vector<32x384xf32> to vector<32x384xbf16>
    %c0_4 = arith.constant 0 : index
    %c0_5 = arith.constant 0 : index
    %6 = vector.load %arg3[%c0_4, %c0_5] : memref<384x128xbf16, #tpu.memory_space<vmem>>, vector<384x128xbf16>
    %cst = arith.constant dense<0.000000e+00> : vector<32x128xf32>
    %7 = tpu.matmul %5, %6, %cst {dimension_numbers = #tpu.dot_dimension_numbers<[1], [0], [0], [1], [0, 0, 1, 1], [], []>} : vector<32x384xbf16>, vector<384x128xbf16>, vector<32x128xf32> -> vector<32x128xf32>
    %8 = arith.addf %4, %7 : vector<32x128xf32>
    %c0_6 = arith.constant 0 : index
    %c0_7 = arith.constant 0 : index
    %9 = vector.load %arg10[%c0_6, %c0_7] : memref<32x128xf32, #tpu.memory_space<vmem>>, vector<32x128xf32>
    tpu.vector_store %arg10[%c0_6, %c0_7], %8 {strides = array<i32>} : memref<32x128xf32, #tpu.memory_space<vmem>>, vector<32x128xf32>,
    %c0_i32_8 = arith.constant 0 : i32
    %10 = arith.cmpi eq, %arg1, %c0_i32_8 : i32
    %11 = arith.extui %10 : i1 to i32
    %c0_i32_9 = arith.constant 0 : i32
    %12 = arith.cmpi ne, %11, %c0_i32_9 : i32
    scf.if %12 {
      %c0_10 = arith.constant 0 : index
      %c0_11 = arith.constant 0 : index
      %13 = vector.load %arg10[%c0_10, %c0_11] : memref<32x128xf32, #tpu.memory_space<vmem>>, vector<32x128xf32>
      %c0_12 = arith.constant 0 : index
      %c0_13 = arith.constant 0 : index
      %14 = vector.load %arg4[%c0_12, %c0_13] : memref<1x128xf32, #tpu.memory_space<vmem>>, vector<1x128xf32>
      %15 = vector.broadcast %14 : vector<1x128xf32> to vector<32x128xf32>
      %16 = arith.addf %13, %15 : vector<32x128xf32>
      %cst_14 = arith.constant 0.000000e+00 : f32
      %17 = vector.broadcast %cst_14 : f32 to vector<32x128xf32>
      %18 = arith.maximumf %16, %17 : vector<32x128xf32>
      %19 = arith.truncf %18 : vector<32x128xf32> to vector<32x128xbf16>
      %c0_15 = arith.constant 0 : index
      %c0_16 = arith.constant 0 : index
      %20 = vector.load %arg5[%c0_15, %c0_16] : memref<128x128xbf16, #tpu.memory_space<vmem>>, vector<128x128xbf16>
      %cst_17 = arith.constant dense<0.000000e+00> : vector<32x128xf32>
      %21 = tpu.matmul %19, %20, %cst_17 {dimension_numbers = #tpu.dot_dimension_numbers<[1], [0], [0], [1], [0, 0, 1, 1], [], []>} : vector<32x128xbf16>, vector<128x128xbf16>, vector<32x128xf32> -> vector<32x128xf32>
      %c0_18 = arith.constant 0 : index
      %c0_19 = arith.constant 0 : index
      %22 = vector.load %arg6[%c0_18, %c0_19] : memref<1x128xf32, #tpu.memory_space<vmem>>, vector<1x128xf32>
      %23 = vector.broadcast %22 : vector<1x128xf32> to vector<32x128xf32>
      %24 = arith.addf %21, %23 : vector<32x128xf32>
      %cst_20 = arith.constant 0.000000e+00 : f32
      %25 = vector.broadcast %cst_20 : f32 to vector<32x128xf32>
      %26 = arith.maximumf %24, %25 : vector<32x128xf32>
      %27 = arith.truncf %26 : vector<32x128xf32> to vector<32x128xbf16>
      %c0_21 = arith.constant 0 : index
      %c0_22 = arith.constant 0 : index
      %28 = vector.load %arg7[%c0_21, %c0_22] : memref<128x128xbf16, #tpu.memory_space<vmem>>, vector<128x128xbf16>
      %cst_23 = arith.constant dense<0.000000e+00> : vector<32x128xf32>
      %29 = tpu.matmul %27, %28, %cst_23 {dimension_numbers = #tpu.dot_dimension_numbers<[1], [0], [0], [1], [0, 0, 1, 1], [], []>} : vector<32x128xbf16>, vector<128x128xbf16>, vector<32x128xf32> -> vector<32x128xf32>
      %c0_24 = arith.constant 0 : index
      %c0_25 = arith.constant 0 : index
      %30 = vector.load %arg8[%c0_24, %c0_25] : memref<1x128xf32, #tpu.memory_space<vmem>>, vector<1x128xf32>
      %31 = vector.broadcast %30 : vector<1x128xf32> to vector<32x128xf32>
      %32 = arith.addf %29, %31 : vector<32x128xf32>
      %cst_26 = arith.constant 0.000000e+00 : f32
      %33 = vector.broadcast %cst_26 : f32 to vector<32x128xf32>
      %34 = arith.maximumf %32, %33 : vector<32x128xf32>
      %35 = vector.broadcast %cst_26 : f32 to vector<32x128xf32>
      %36 = arith.subf %32, %35 : vector<32x128xf32>
      %37 = arith.cmpf one, %36, %36 : vector<32x128xf32>
      %38 = vector.broadcast %cst_26 : f32 to vector<32x128xf32>
      %39 = arith.addf %32, %38 : vector<32x128xf32>
      %40 = math.absf %36 : vector<32x128xf32>
      %cst_27 = arith.constant 0.000000e+00 : f32
      %41 = vector.broadcast %cst_27 : f32 to vector<32x128xf32>
      %42 = arith.subf %41, %40 : vector<32x128xf32>
      %43 = math.exp %42 : vector<32x128xf32>
      %44 = math.log1p %43 : vector<32x128xf32>
      %45 = arith.addf %34, %44 : vector<32x128xf32>
      %46 = arith.select %37, %39, %45 : vector<32x128xi1>, vector<32x128xf32>
      %cst_28 = arith.constant 9.99999974E-6 : f32
      %47 = vector.broadcast %cst_28 : f32 to vector<32x128xf32>
      %48 = arith.maximumf %46, %47 : vector<32x128xf32>
      %c0_29 = arith.constant 0 : index
      %c0_30 = arith.constant 0 : index
      %49 = vector.load %arg9[%c0_29, %c0_30] : memref<32x128xf32, #tpu.memory_space<vmem>>, vector<32x128xf32>
      tpu.vector_store %arg9[%c0_29, %c0_30], %48 {strides = array<i32>} : memref<32x128xf32, #tpu.memory_space<vmem>>, vector<32x128xf32>,
    } else {
    }
    return
  }
  func.func @transform_0(%arg0: i32, %arg1: i32) -> (i32, i32) {
    %c0_i32 = arith.constant 0 : i32
    return %arg0, %arg1 : i32, i32
  }
  func.func @transform_1(%arg0: i32, %arg1: i32) -> (i32, i32) {
    %c0_i32 = arith.constant 0 : i32
    %c0_i32_0 = arith.constant 0 : i32
    return %arg1, %c0_i32 : i32, i32
  }
  func.func @transform_2(%arg0: i32, %arg1: i32) -> (i32, i32) {
    %c0_i32 = arith.constant 0 : i32
    %c0_i32_0 = arith.constant 0 : i32
    %c0_i32_1 = arith.constant 0 : i32
    return %c0_i32, %c0_i32_0 : i32, i32
  }
  func.func @transform_3(%arg0: i32, %arg1: i32) -> (i32, i32) {
    %c0_i32 = arith.constant 0 : i32
    %c0_i32_0 = arith.constant 0 : i32
    %c0_i32_1 = arith.constant 0 : i32
    return %c0_i32, %c0_i32_0 : i32, i32
  }
  func.func @transform_4(%arg0: i32, %arg1: i32) -> (i32, i32) {
    %c0_i32 = arith.constant 0 : i32
    %c0_i32_0 = arith.constant 0 : i32
    %c0_i32_1 = arith.constant 0 : i32
    return %c0_i32, %c0_i32_0 : i32, i32
  }
  func.func @transform_5(%arg0: i32, %arg1: i32) -> (i32, i32) {
    %c0_i32 = arith.constant 0 : i32
    %c0_i32_0 = arith.constant 0 : i32
    %c0_i32_1 = arith.constant 0 : i32
    return %c0_i32, %c0_i32_0 : i32, i32
  }
  func.func @transform_6(%arg0: i32, %arg1: i32) -> (i32, i32) {
    %c0_i32 = arith.constant 0 : i32
    %c0_i32_0 = arith.constant 0 : i32
    %c0_i32_1 = arith.constant 0 : i32
    return %c0_i32, %c0_i32_0 : i32, i32
  }
  func.func @transform_7(%arg0: i32, %arg1: i32) -> (i32, i32) {
    %c0_i32 = arith.constant 0 : i32
    %c0_i32_0 = arith.constant 0 : i32
    return %arg0, %c0_i32 : i32, i32
  }
}

</mosaic_0001>

<llo_original>
// kernel: tpu_custom_call.1
$region0: #{tpu_custom_call.1}
  #allocation0 [shape = 'u32[]', space=smem, size = 0x4, offset = 0x4, fixed_abs, tag = 'smem constant byte address 0x4 - core index']
  #allocation1 [shape = 'u32[72,128]{1,0:T(1,128)}', space=vmem, size = 0x9000, scoped, tag = 'internal scratch']
  #allocation2 [shape = 'f32[32,128]{1,0:T(8,128)}', space=vmem, size = 0x4000, scoped, tag = 'scratch operand']
  %s0 = inlined_call_operand.hbm [shape: f32[24,384], index: 0, kind: input, shape index: {}]
  %s1 = inlined_call_operand.hbm [shape: bf16[384,128], index: 1, kind: input, shape index: {}]
  %s2 = inlined_call_operand.vmem [shape: f32[1,128], index: 2, kind: input, shape index: {}]
  %s3 = inlined_call_operand.hbm [shape: bf16[128,128], index: 3, kind: input, shape index: {}]
  %s4 = inlined_call_operand.vmem [shape: f32[1,128], index: 4, kind: input, shape index: {}]
  %s5 = inlined_call_operand.hbm [shape: bf16[128,128], index: 5, kind: input, shape index: {}]
  %s6 = inlined_call_operand.vmem [shape: f32[1,128], index: 6, kind: input, shape index: {}]
  %s7 = inlined_call_operand.hbm [shape: f32[32,128], index: 7, kind: output, shape index: {}]
  %s8 = sld [smem:[#allocation0]]
  $region62: #{tpu_custom_call.1} parent=0
    _
  %s10 = ssub.s32 1, %s8
  %s11 = scalar_select 0, %s10, %s8
  $region1: #{tpu_custom_call.1} parent=0
    #allocation3 [shape = 'u8[49152]{0}', space=vmem, size = 0xc000, scoped, tag = 'input window, operand 0, single buffered']
    #allocation4 [shape = 's32[1]{0}', space=sflag, size = 0x4, scoped, tag = 'scoped memory for tpu_custom_call.1']
    #allocation5 [shape = 's32[1]{0}', space=sflag, size = 0x4, scoped, tag = 'scoped memory for tpu_custom_call.1']
    #allocation6 [shape = 'u8[98304]{0}', space=vmem, size = 0x18000, scoped, tag = 'input window, operand 1, single buffered']
    #allocation7 [shape = 's32[1]{0}', space=sflag, size = 0x4, scoped, tag = 'scoped memory for tpu_custom_call.1']
    #allocation8 [shape = 'u8[32768]{0}', space=vmem, size = 0x8000, scoped, tag = 'input window, operand 3, single buffered']
    #allocation9 [shape = 'u8[32768]{0}', space=vmem, size = 0x8000, scoped, tag = 'input window, operand 5, single buffered']
    #allocation10 [shape = 's32[1]{0}', space=sflag, size = 0x4, scoped, tag = 'scoped memory for tpu_custom_call.1']
    #allocation11 [shape = 'u8[16384]{0}', space=vmem, size = 0x4000, scoped, tag = 'output window, operand 0, single buffered']
    %12 = vsyncpa [#allocation4], 0
    %13 = vsyncpa [#allocation7], 0
    %14 = vsyncpa [#allocation10], 0
    %15 = vsyncpa [#allocation5], 0
    // Predicated region
    $region2: #{tpu_custom_call.1} parent=1 // pred_check
      _
    $region3: #{tpu_custom_call.1} parent=1 // pred_check_branch
      %17 = sbr.rel (0) target = $region5
    $region4: #{tpu_custom_call.1} parent=1 // pred_region
      %19 = vsyncadd [#allocation4], 384
      %s20 = sshll.u32 %s0, 4
      %s21 = int_to_ptr.hbm [resolvable:$true] %s20
      %s22 = sshll.u32 [#allocation3], 4
      %s23 = int_to_ptr.vmem [resolvable:$true] %s22
      %28 = dma.hbm_to_vmem [thread:$0]  %s21, 1152, %s23, [#allocation4], 384, 384, 24
    $region5: #{tpu_custom_call.1} parent=1 // pred_fallthru
      _
    // Predicated region
    $region6: #{tpu_custom_call.1} parent=1 // pred_check
      _
    $region7: #{tpu_custom_call.1} parent=1 // pred_check_branch
      %30 = sbr.rel (0) target = $region9
    $region8: #{tpu_custom_call.1} parent=1 // pred_region
      %32 = vsyncadd [#allocation7], 0
      %s33 = sshll.u32 %s1, 4
      %s34 = int_to_ptr.hbm [resolvable:$true] %s33
      %s35 = sshll.u32 [#allocation6], 4
      %s36 = int_to_ptr.vmem [resolvable:$true] %s35
      %41 = dma.hbm_to_vmem [thread:$0]  %s34, 3072, %s36, [#allocation7], 64, 64, 4
    $region9: #{tpu_custom_call.1} parent=1 // pred_fallthru
      _
    // Predicated region
    $region10: #{tpu_custom_call.1} parent=1 // pred_check
      _
    $region11: #{tpu_custom_call.1} parent=1 // pred_check_branch
      %43 = sbr.rel (0) target = $region13
    $region12: #{tpu_custom_call.1} parent=1 // pred_region
      _
    $region13: #{tpu_custom_call.1} parent=1 // pred_fallthru
      _
    // Predicated region
    $region14: #{tpu_custom_call.1} parent=1 // pred_check
      _
    $region15: #{tpu_custom_call.1} parent=1 // pred_check_branch
      %45 = sbr.rel (0) target = $region17
    $region16: #{tpu_custom_call.1} parent=1 // pred_region
      %47 = vsyncadd [#allocation7], 0
      %s48 = sshll.u32 %s3, 4
      %s49 = int_to_ptr.hbm [resolvable:$true] %s48
      %s50 = sshll.u32 [#allocation8], 4
      %s51 = int_to_ptr.vmem [resolvable:$true] %s50
      %56 = dma.hbm_to_vmem [thread:$0]  %s49, 1024, %s51, [#allocation7], 64, 64, 4
    $region17: #{tpu_custom_call.1} parent=1 // pred_fallthru
      _
    // Predicated region
    $region18: #{tpu_custom_call.1} parent=1 // pred_check
      _
    $region19: #{tpu_custom_call.1} parent=1 // pred_check_branch
      %58 = sbr.rel (0) target = $region21
    $region20: #{tpu_custom_call.1} parent=1 // pred_region
      _
    $region21: #{tpu_custom_call.1} parent=1 // pred_fallthru
      _
    // Predicated region
    $region22: #{tpu_custom_call.1} parent=1 // pred_check
      _
    $region23: #{tpu_custom_call.1} parent=1 // pred_check_branch
      %60 = sbr.rel (0) target = $region25
    $region24: #{tpu_custom_call.1} parent=1 // pred_region
      %62 = vsyncadd [#allocation10], 0
      %s63 = sshll.u32 %s5, 4
      %s64 = int_to_ptr.hbm [resolvable:$true] %s63
      %s65 = sshll.u32 [#allocation9], 4
      %s66 = int_to_ptr.vmem [resolvable:$true] %s65
      %71 = dma.hbm_to_vmem [thread:$0]  %s64, 1024, %s66, [#allocation10], 64, 64, 4
    $region25: #{tpu_custom_call.1} parent=1 // pred_fallthru
      _
    // Predicated region
    $region26: #{tpu_custom_call.1} parent=1 // pred_check
      _
    $region27: #{tpu_custom_call.1} parent=1 // pred_check_branch
      %73 = sbr.rel (0) target = $region29
    $region28: #{tpu_custom_call.1} parent=1 // pred_region
      _
    $region29: #{tpu_custom_call.1} parent=1 // pred_fallthru
      _
    // Predicated region
    $region30: #{tpu_custom_call.1} parent=1 // pred_check
      _
    $region31: #{tpu_custom_call.1} parent=1 // pred_check_branch
      %75 = sbr.rel (0) target = $region33
    $region32: #{tpu_custom_call.1} parent=1 // pred_region
      %77 = dma.done [#allocation4], 1536
    $region33: #{tpu_custom_call.1} parent=1 // pred_fallthru
      _
    // Predicated region
    $region34: #{tpu_custom_call.1} parent=1 // pred_check
      _
    $region35: #{tpu_custom_call.1} parent=1 // pred_check_branch
      %79 = sbr.rel (0) target = $region37
    $region36: #{tpu_custom_call.1} parent=1 // pred_region
      %81 = dma.done [#allocation7], 3072
    $region37: #{tpu_custom_call.1} parent=1 // pred_fallthru
      _
    // Predicated region
    $region38: #{tpu_custom_call.1} parent=1 // pred_check
      _
    $region39: #{tpu_custom_call.1} parent=1 // pred_check_branch
      %83 = sbr.rel (0) target = $region41
    $region40: #{tpu_custom_call.1} parent=1 // pred_region
      %85 = dma.done [#allocation7], 1024
    $region41: #{tpu_custom_call.1} parent=1 // pred_fallthru
      _
    // Predicated region
    $region42: #{tpu_custom_call.1} parent=1 // pred_check
      _
    $region43: #{tpu_custom_call.1} parent=1 // pred_check_branch
      %87 = sbr.rel (0) target = $region45
    $region44: #{tpu_custom_call.1} parent=1 // pred_region
      %89 = dma.done [#allocation10], 1024
    $region45: #{tpu_custom_call.1} parent=1 // pred_fallthru
      _
    %p90 = scmp.eq.s32.totalorder 0, 0
    // Predicated region
    $region46: #{tpu_custom_call.1} parent=1 // pred_check
      %p91 = pneg %p90
    $region47: #{tpu_custom_call.1} parent=1 // pred_check_branch
      %93 = sbr.rel (%p91) target = $region49
    $region48: #{tpu_custom_call.1} parent=1 // pred_region
      %94 = vst [vmem:[#allocation2] sm:$0xff] 0.0
      %95 = vst [vmem:[#allocation2 + $0x8] sm:$0xff] 0.0
      %96 = vst [vmem:[#allocation2 + $0x10] sm:$0xff] 0.0
      %97 = vst [vmem:[#allocation2 + $0x18] sm:$0xff] 0.0
    $region49: #{tpu_custom_call.1} parent=1 // pred_fallthru
      _
    %v98 = vld [vmem:[#allocation3] sm:$0xff]
    %v99 = vld [vmem:[#allocation3 + $0x8] sm:$0xff]
    %v100 = vld [vmem:[#allocation3 + $0x10] sm:$0xff]
    %v101 = vld [vmem:[#allocation3 + $0x18] sm:$0xff]
    %v102 = vld [vmem:[#allocation3 + $0x20] sm:$0xff]
    %v103 = vld [vmem:[#allocation3 + $0x28] sm:$0xff]
    %v104 = vld [vmem:[#allocation3 + $0x30] sm:$0xff]
    %v105 = vld [vmem:[#allocation3 + $0x38] sm:$0xff]
    %v106 = vld [vmem:[#allocation3 + $0x40] sm:$0xff]
    %v107 = vld [vmem:[#allocation3 + $0x48] sm:$0xff]
    %v108 = vld [vmem:[#allocation3 + $0x50] sm:$0xff]
    %v109 = vld [vmem:[#allocation3 + $0x58] sm:$0xff]
    %v110 = vld [vmem:[#allocation2] sm:$0xff]
    %v111 = vld [vmem:[#allocation2 + $0x8] sm:$0xff]
    %v112 = vld [vmem:[#allocation2 + $0x10] sm:$0xff]
    %v113 = vld [vmem:[#allocation2 + $0x18] sm:$0xff]
    %v114 = vpack.c.bf16 %v101, %v98
    %v115 = vpack.c.bf16 %v102, %v99
    %v116 = vpack.c.bf16 %v103, %v100
    %v117 = vpack.c.bf16 %v107, %v104
    %v118 = vpack.c.bf16 %v108, %v105
    %v119 = vpack.c.bf16 %v109, %v106
    %v120 = vld [vmem:[#allocation6] sm:$0xf]
    %v121 = vld [vmem:[#allocation6 + $0x4] sm:$0xf]
    %v122 = vld [vmem:[#allocation6 + $0x8] sm:$0xf]
    %v123 = vld [vmem:[#allocation6 + $0xc] sm:$0xf]
    %v124 = vld [vmem:[#allocation6 + $0x10] sm:$0xf]
    %v125 = vld [vmem:[#allocation6 + $0x14] sm:$0xf]
    %v126 = vld [vmem:[#allocation6 + $0x18] sm:$0xf]
    %v127 = vld [vmem:[#allocation6 + $0x1c] sm:$0xf]
    %v128 = vld [vmem:[#allocation6 + $0x20] sm:$0xf]
    %v129 = vld [vmem:[#allocation6 + $0x24] sm:$0xf]
    %v130 = vld [vmem:[#allocation6 + $0x28] sm:$0xf]
    %v131 = vld [vmem:[#allocation6 + $0x2c] sm:$0xf]
    %v132 = vld [vmem:[#allocation6 + $0x30] sm:$0xf]
    %v133 = vld [vmem:[#allocation6 + $0x34] sm:$0xf]
    %v134 = vld [vmem:[#allocation6 + $0x38] sm:$0xf]
    %v135 = vld [vmem:[#allocation6 + $0x3c] sm:$0xf]
    %v136 = vld [vmem:[#allocation6 + $0x40] sm:$0xf]
    %v137 = vld [vmem:[#allocation6 + $0x44] sm:$0xf]
    %v138 = vld [vmem:[#allocation6 + $0x48] sm:$0xf]
    %v139 = vld [vmem:[#allocation6 + $0x4c] sm:$0xf]
    %v140 = vld [vmem:[#allocation6 + $0x50] sm:$0xf]
    %v141 = vld [vmem:[#allocation6 + $0x54] sm:$0xf]
    %v142 = vld [vmem:[#allocation6 + $0x58] sm:$0xf]
    %v143 = vld [vmem:[#allocation6 + $0x5c] sm:$0xf]
    %v144 = vld [vmem:[#allocation6 + $0x60] sm:$0xf]
    %v145 = vld [vmem:[#allocation6 + $0x64] sm:$0xf]
    %v146 = vld [vmem:[#allocation6 + $0x68] sm:$0xf]
    %v147 = vld [vmem:[#allocation6 + $0x6c] sm:$0xf]
    %v148 = vld [vmem:[#allocation6 + $0x70] sm:$0xf]
    %v149 = vld [vmem:[#allocation6 + $0x74] sm:$0xf]
    %v150 = vld [vmem:[#allocation6 + $0x78] sm:$0xf]
    %v151 = vld [vmem:[#allocation6 + $0x7c] sm:$0xf]
    %v152 = vld [vmem:[#allocation6 + $0x80] sm:$0xf]
    %v153 = vld [vmem:[#allocation6 + $0x84] sm:$0xf]
    %v154 = vld [vmem:[#allocation6 + $0x88] sm:$0xf]
    %v155 = vld [vmem:[#allocation6 + $0x8c] sm:$0xf]
    %v156 = vld [vmem:[#allocation6 + $0x90] sm:$0xf]
    %v157 = vld [vmem:[#allocation6 + $0x94] sm:$0xf]
    %v158 = vld [vmem:[#allocation6 + $0x98] sm:$0xf]
    %v159 = vld [vmem:[#allocation6 + $0x9c] sm:$0xf]
    %v160 = vld [vmem:[#allocation6 + $0xa0] sm:$0xf]
    %v161 = vld [vmem:[#allocation6 + $0xa4] sm:$0xf]
    %v162 = vld [vmem:[#allocation6 + $0xa8] sm:$0xf]
    %v163 = vld [vmem:[#allocation6 + $0xac] sm:$0xf]
    %v164 = vld [vmem:[#allocation6 + $0xb0] sm:$0xf]
    %v165 = vld [vmem:[#allocation6 + $0xb4] sm:$0xf]
    %v166 = vld [vmem:[#allocation6 + $0xb8] sm:$0xf]
    %v167 = vld [vmem:[#allocation6 + $0xbc] sm:$0xf]
    %v216 = vunpack.c.l.b16 %v120
    %v217 = vunpack.c.l.b16 %v121
    %v218 = vunpack.c.l.b16 %v122
    %v219 = vunpack.c.l.b16 %v123
    %v220 = vunpack.c.l.b16 %v124
    %v221 = vunpack.c.l.b16 %v125
    %v222 = vunpack.c.l.b16 %v126
    %v223 = vunpack.c.l.b16 %v127
    %v224 = vunpack.c.l.b16 %v128
    %v225 = vunpack.c.l.b16 %v129
    %v226 = vunpack.c.l.b16 %v130
    %v227 = vunpack.c.l.b16 %v131
    %v228 = vunpack.c.l.b16 %v132
    %v229 = vunpack.c.l.b16 %v133
    %v230 = vunpack.c.l.b16 %v134
    %v231 = vunpack.c.l.b16 %v135
    %v232 = vunpack.c.l.b16 %v136
    %v233 = vunpack.c.l.b16 %v137
    %v234 = vunpack.c.l.b16 %v138
    %v235 = vunpack.c.l.b16 %v139
    %v236 = vunpack.c.l.b16 %v140
    %v237 = vunpack.c.l.b16 %v141
    %v238 = vunpack.c.l.b16 %v142
    %v239 = vunpack.c.l.b16 %v143
    %v240 = vunpack.c.l.b16 %v144
    %v241 = vunpack.c.l.b16 %v145
    %v242 = vunpack.c.l.b16 %v146
    %v243 = vunpack.c.l.b16 %v147
    %v244 = vunpack.c.l.b16 %v148
    %v245 = vunpack.c.l.b16 %v149
    %v246 = vunpack.c.l.b16 %v150
    %v247 = vunpack.c.l.b16 %v151
    %v248 = vunpack.c.l.b16 %v152
    %v249 = vunpack.c.l.b16 %v153
    %v250 = vunpack.c.l.b16 %v154
    %v251 = vunpack.c.l.b16 %v155
    %v252 = vunpack.c.l.b16 %v156
    %v253 = vunpack.c.l.b16 %v157
    %v254 = vunpack.c.l.b16 %v158
    %v255 = vunpack.c.l.b16 %v159
    %v256 = vunpack.c.l.b16 %v160
    %v257 = vunpack.c.l.b16 %v161
    %v258 = vunpack.c.l.b16 %v162
    %v259 = vunpack.c.l.b16 %v163
    %v260 = vunpack.c.l.b16 %v164
    %v261 = vunpack.c.l.b16 %v165
    %v262 = vunpack.c.l.b16 %v166
    %v263 = vunpack.c.l.b16 %v167
    %v264 = vpack.c.b16 %v217, %v216
    %v265 = vpack.c.b16 %v219, %v218
    %v266 = vpack.c.b16 %v221, %v220
    %v267 = vpack.c.b16 %v223, %v222
    %v268 = vpack.c.b16 %v225, %v224
    %v269 = vpack.c.b16 %v227, %v226
    %v270 = vpack.c.b16 %v229, %v228
    %v271 = vpack.c.b16 %v231, %v230
    %v272 = vpack.c.b16 %v233, %v232
    %v273 = vpack.c.b16 %v235, %v234
    %v274 = vpack.c.b16 %v237, %v236
    %v275 = vpack.c.b16 %v239, %v238
    %v276 = vpack.c.b16 %v241, %v240
    %v277 = vpack.c.b16 %v243, %v242
    %v278 = vpack.c.b16 %v245, %v244
    %v279 = vpack.c.b16 %v247, %v246
    %v280 = vpack.c.b16 %v249, %v248
    %v281 = vpack.c.b16 %v251, %v250
    %v282 = vpack.c.b16 %v253, %v252
    %v283 = vpack.c.b16 %v255, %v254
    %v284 = vpack.c.b16 %v257, %v256
    %v285 = vpack.c.b16 %v259, %v258
    %v286 = vpack.c.b16 %v261, %v260
    %v287 = vpack.c.b16 %v263, %v262
    %312 = vmatpush.bf16.msra.mxu0 %v271
    %313 = vmatpush.bf16.msra.mxu0 %v270
    %314 = vmatpush.bf16.msra.mxu0 %v269
    %315 = vmatpush.bf16.msra.mxu0 %v268
    %316 = vmatpush.bf16.msra.mxu0 %v267
    %317 = vmatpush.bf16.msra.mxu0 %v266
    %318 = vmatpush.bf16.msra.mxu0 %v265
    %319 = vmatpush.bf16.msra.mxu0 %v264
    %320 = vmatmul.bf16.gmra.mxu0 %v114
    %v321 = vpop.f32.mrf.mxu0
    %v322 = vadd.f32 0.0, %v321
    %v323 = vpop.f32.mrf.mxu0
    %v324 = vadd.f32 0.0, %v323
    %325 = vmatmul.bf16.gmra.mxu0 %v117
    %v326 = vpop.f32.mrf.mxu0
    %v327 = vadd.f32 0.0, %v326
    %v328 = vpop.f32.mrf.mxu0
    %v329 = vadd.f32 0.0, %v328
    %330 = vdwg.mxu0
    %331 = vmatpush.bf16.msra.mxu0 %v279
    %332 = vmatpush.bf16.msra.mxu0 %v278
    %333 = vmatpush.bf16.msra.mxu0 %v277
    %334 = vmatpush.bf16.msra.mxu0 %v276
    %335 = vmatpush.bf16.msra.mxu0 %v275
    %336 = vmatpush.bf16.msra.mxu0 %v274
    %337 = vmatpush.bf16.msra.mxu0 %v273
    %338 = vmatpush.bf16.msra.mxu0 %v272
    %339 = vmatmul.bf16.gmra.mxu0 %v115
    %v340 = vpop.f32.mrf.mxu0
    %v341 = vadd.f32 %v322, %v340
    %v342 = vpop.f32.mrf.mxu0
    %v343 = vadd.f32 %v324, %v342
    %344 = vmatmul.bf16.gmra.mxu0 %v118
    %v345 = vpop.f32.mrf.mxu0
    %v346 = vadd.f32 %v327, %v345
    %v347 = vpop.f32.mrf.mxu0
    %v348 = vadd.f32 %v329, %v347
    %349 = vdwg.mxu0
    %350 = vmatpush.bf16.msra.mxu0 %v287
    %351 = vmatpush.bf16.msra.mxu0 %v286
    %352 = vmatpush.bf16.msra.mxu0 %v285
    %353 = vmatpush.bf16.msra.mxu0 %v284
    %354 = vmatpush.bf16.msra.mxu0 %v283
    %355 = vmatpush.bf16.msra.mxu0 %v282
    %356 = vmatpush.bf16.msra.mxu0 %v281
    %357 = vmatpush.bf16.msra.mxu0 %v280
    %358 = vmatmul.bf16.gmra.mxu0 %v116
    %v359 = vpop.f32.mrf.mxu0
    %v360 = vadd.f32 %v341, %v359
    %v361 = vpop.f32.mrf.mxu0
    %v362 = vadd.f32 %v343, %v361
    %363 = vmatmul.bf16.gmra.mxu0 %v119
    %v364 = vpop.f32.mrf.mxu0
    %v365 = vadd.f32 %v346, %v364
    %v366 = vpop.f32.mrf.mxu0
    %v367 = vadd.f32 %v348, %v366
    %368 = vdwg.mxu0
    %v369 = vadd.f32 %v110, %v360
    %v370 = vadd.f32 %v111, %v362
    %v371 = vadd.f32 %v112, %v365
    %v372 = vadd.f32 %v113, %v367
    %373 = vst [vmem:[#allocation2] sm:$0xff] %v369
    %374 = vst [vmem:[#allocation2 + $0x8] sm:$0xff] %v370
    %375 = vst [vmem:[#allocation2 + $0x10] sm:$0xff] %v371
    %376 = vst [vmem:[#allocation2 + $0x18] sm:$0xff] %v372
    // Predicated region
    $region50: #{tpu_custom_call.1} parent=1 // pred_check
      %p377 = pneg %p90
    $region51: #{tpu_custom_call.1} parent=1 // pred_check_branch
      %379 = sbr.rel (%p377) target = $region53
    $region52: #{tpu_custom_call.1} parent=1 // pred_region
      %v380 = vld [vmem:[#allocation2] sm:$0xff]
      %v381 = vld [vmem:[#allocation2 + $0x8] sm:$0xff]
      %v382 = vld [vmem:[#allocation2 + $0x10] sm:$0xff]
      %v383 = vld [vmem:[#allocation2 + $0x18] sm:$0xff]
      %v384 = vld [vmem:[%s2] sm:$0x1]
      %v386 = vperm.slane %v384, 0
      %v388 = vadd.f32 %v380, %v386
      %v389 = vadd.f32 %v381, %v386
      %v390 = vadd.f32 %v382, %v386
      %v391 = vadd.f32 %v383, %v386
      %v392 = vmax.f32 %v388, 0.0
      %v393 = vmax.f32 %v389, 0.0
      %v394 = vmax.f32 %v390, 0.0
      %v395 = vmax.f32 %v391, 0.0
      %v396 = vpack.c.bf16 %v393, %v392
      %v397 = vpack.c.bf16 %v395, %v394
      %v398 = vld [vmem:[#allocation8] sm:$0xf]
      %v399 = vld [vmem:[#allocation8 + $0x4] sm:$0xf]
      %v400 = vld [vmem:[#allocation8 + $0x8] sm:$0xf]
      %v401 = vld [vmem:[#allocation8 + $0xc] sm:$0xf]
      %v402 = vld [vmem:[#allocation8 + $0x10] sm:$0xf]
      %v403 = vld [vmem:[#allocation8 + $0x14] sm:$0xf]
      %v404 = vld [vmem:[#allocation8 + $0x18] sm:$0xf]
      %v405 = vld [vmem:[#allocation8 + $0x1c] sm:$0xf]
      %v406 = vld [vmem:[#allocation8 + $0x20] sm:$0xf]
      %v407 = vld [vmem:[#allocation8 + $0x24] sm:$0xf]
      %v408 = vld [vmem:[#allocation8 + $0x28] sm:$0xf]
      %v409 = vld [vmem:[#allocation8 + $0x2c] sm:$0xf]
      %v410 = vld [vmem:[#allocation8 + $0x30] sm:$0xf]
      %v411 = vld [vmem:[#allocation8 + $0x34] sm:$0xf]
      %v412 = vld [vmem:[#allocation8 + $0x38] sm:$0xf]
      %v413 = vld [vmem:[#allocation8 + $0x3c] sm:$0xf]
      %v414 = vld [vmem:[%s4] sm:$0x1]
      %v416 = vperm.slane %v414, 0
      %v434 = vunpack.c.l.b16 %v398
      %v435 = vunpack.c.l.b16 %v399
      %v436 = vunpack.c.l.b16 %v400
      %v437 = vunpack.c.l.b16 %v401
      %v438 = vunpack.c.l.b16 %v402
      %v439 = vunpack.c.l.b16 %v403
      %v440 = vunpack.c.l.b16 %v404
      %v441 = vunpack.c.l.b16 %v405
      %v442 = vunpack.c.l.b16 %v406
      %v443 = vunpack.c.l.b16 %v407
      %v444 = vunpack.c.l.b16 %v408
      %v445 = vunpack.c.l.b16 %v409
      %v446 = vunpack.c.l.b16 %v410
      %v447 = vunpack.c.l.b16 %v411
      %v448 = vunpack.c.l.b16 %v412
      %v449 = vunpack.c.l.b16 %v413
      %v450 = vpack.c.b16 %v435, %v434
      %v451 = vpack.c.b16 %v437, %v436
      %v452 = vpack.c.b16 %v439, %v438
      %v453 = vpack.c.b16 %v441, %v440
      %v454 = vpack.c.b16 %v443, %v442
      %v455 = vpack.c.b16 %v445, %v444
      %v456 = vpack.c.b16 %v447, %v446
      %v457 = vpack.c.b16 %v449, %v448
      %466 = vmatpush.bf16.msra.mxu0 %v457
      %467 = vmatpush.bf16.msra.mxu0 %v456
      %468 = vmatpush.bf16.msra.mxu0 %v455
      %469 = vmatpush.bf16.msra.mxu0 %v454
      %470 = vmatpush.bf16.msra.mxu0 %v453
      %471 = vmatpush.bf16.msra.mxu0 %v452
      %472 = vmatpush.bf16.msra.mxu0 %v451
      %473 = vmatpush.bf16.msra.mxu0 %v450
      %474 = vmatmul.bf16.gmra.mxu0 %v396
      %v475 = vpop.f32.mrf.mxu0
      %v476 = vadd.f32 %v416, %v475
      %v477 = vpop.f32.mrf.mxu0
      %v478 = vadd.f32 %v416, %v477
      %479 = vmatmul.bf16.gmra.mxu0 %v397
      %v480 = vpop.f32.mrf.mxu0
      %v481 = vadd.f32 %v416, %v480
      %v482 = vpop.f32.mrf.mxu0
      %v483 = vadd.f32 %v416, %v482
      %484 = vdwg.mxu0
      %v485 = vmax.f32 %v476, 0.0
      %v486 = vmax.f32 %v478, 0.0
      %v487 = vmax.f32 %v481, 0.0
      %v488 = vmax.f32 %v483, 0.0
      %v489 = vpack.c.bf16 %v486, %v485
      %v490 = vpack.c.bf16 %v488, %v487
      %v491 = vld [vmem:[#allocation9] sm:$0xf]
      %v492 = vld [vmem:[#allocation9 + $0x4] sm:$0xf]
      %v493 = vld [vmem:[#allocation9 + $0x8] sm:$0xf]
      %v494 = vld [vmem:[#allocation9 + $0xc] sm:$0xf]
      %v495 = vld [vmem:[#allocation9 + $0x10] sm:$0xf]
      %v496 = vld [vmem:[#allocation9 + $0x14] sm:$0xf]
      %v497 = vld [vmem:[#allocation9 + $0x18] sm:$0xf]
      %v498 = vld [vmem:[#allocation9 + $0x1c] sm:$0xf]
      %v499 = vld [vmem:[#allocation9 + $0x20] sm:$0xf]
      %v500 = vld [vmem:[#allocation9 + $0x24] sm:$0xf]
      %v501 = vld [vmem:[#allocation9 + $0x28] sm:$0xf]
      %v502 = vld [vmem:[#allocation9 + $0x2c] sm:$0xf]
      %v503 = vld [vmem:[#allocation9 + $0x30] sm:$0xf]
      %v504 = vld [vmem:[#allocation9 + $0x34] sm:$0xf]
      %v505 = vld [vmem:[#allocation9 + $0x38] sm:$0xf]
      %v506 = vld [vmem:[#allocation9 + $0x3c] sm:$0xf]
      %v507 = vld [vmem:[%s6] sm:$0x1]
      %v509 = vperm.slane %v507, 0
      %v527 = vunpack.c.l.b16 %v491
      %v528 = vunpack.c.l.b16 %v492
      %v529 = vunpack.c.l.b16 %v493
      %v530 = vunpack.c.l.b16 %v494
      %v531 = vunpack.c.l.b16 %v495
      %v532 = vunpack.c.l.b16 %v496
      %v533 = vunpack.c.l.b16 %v497
      %v534 = vunpack.c.l.b16 %v498
      %v535 = vunpack.c.l.b16 %v499
      %v536 = vunpack.c.l.b16 %v500
      %v537 = vunpack.c.l.b16 %v501
      %v538 = vunpack.c.l.b16 %v502
      %v539 = vunpack.c.l.b16 %v503
      %v540 = vunpack.c.l.b16 %v504
      %v541 = vunpack.c.l.b16 %v505
      %v542 = vunpack.c.l.b16 %v506
      %v543 = vpack.c.b16 %v528, %v527
      %v544 = vpack.c.b16 %v530, %v529
      %v545 = vpack.c.b16 %v532, %v531
      %v546 = vpack.c.b16 %v534, %v533
      %v547 = vpack.c.b16 %v536, %v535
      %v548 = vpack.c.b16 %v538, %v537
      %v549 = vpack.c.b16 %v540, %v539
      %v550 = vpack.c.b16 %v542, %v541
      %559 = vmatpush.bf16.msra.mxu0 %v550
      %560 = vmatpush.bf16.msra.mxu0 %v549
      %561 = vmatpush.bf16.msra.mxu0 %v548
      %562 = vmatpush.bf16.msra.mxu0 %v547
      %563 = vmatpush.bf16.msra.mxu0 %v546
      %564 = vmatpush.bf16.msra.mxu0 %v545
      %565 = vmatpush.bf16.msra.mxu0 %v544
      %566 = vmatpush.bf16.msra.mxu0 %v543
      %567 = vmatmul.bf16.gmra.mxu0 %v489
      %v568 = vpop.f32.mrf.mxu0
      %v569 = vadd.f32 %v509, %v568
      %v570 = vpop.f32.mrf.mxu0
      %v571 = vadd.f32 %v509, %v570
      %572 = vmatmul.bf16.gmra.mxu0 %v490
      %v573 = vpop.f32.mrf.mxu0
      %v574 = vadd.f32 %v509, %v573
      %v575 = vpop.f32.mrf.mxu0
      %v576 = vadd.f32 %v509, %v575
      %577 = vdwg.mxu0
      %v578 = vmax.f32 %v569, 0.0
      %v579 = vmax.f32 %v571, 0.0
      %v580 = vmax.f32 %v574, 0.0
      %v581 = vmax.f32 %v576, 0.0
      %vm582 = vcmp.ne.f32.partialorder %v569, %v569
      %vm583 = vcmp.ne.f32.partialorder %v571, %v571
      %vm584 = vcmp.ne.f32.partialorder %v574, %v574
      %vm585 = vcmp.ne.f32.partialorder %v576, %v576
      %v586 = vadd.f32 %v569, 0.0
      %v587 = vadd.f32 %v571, 0.0
      %v588 = vadd.f32 %v574, 0.0
      %v589 = vadd.f32 %v576, 0.0
      %v590 = vand.u32 2147483647, %v569
      %v591 = vand.u32 2147483647, %v571
      %v592 = vand.u32 2147483647, %v574
      %v593 = vand.u32 2147483647, %v576
      %v594 = vsub.f32 0.0, %v590
      %v595 = vsub.f32 0.0, %v591
      %v596 = vsub.f32 0.0, %v592
      %v597 = vsub.f32 0.0, %v593
      %v598 = vmul.f32 %v594, 1.442695
      %v599 = vpow.pop %v598
      %v600 = vmul.f32 %v595, 1.442695
      %v601 = vpow.pop %v600
      %v602 = vmul.f32 %v596, 1.442695
      %v603 = vpow.pop %v602
      %v604 = vmul.f32 %v597, 1.442695
      %v605 = vpow.pop %v604
      %v606 = vadd.f32 %v599, 1.0
      %v607 = vlog2.pop %v606
      %v608 = vmul.f32 %v607, 0.6931472
      %v609 = vmul.f32 -0.5, %v599
      %v610 = vadd.f32 %v609, 1.0
      %v611 = vmul.f32 %v610, %v599
      %v612 = vand.u32 2147483647, %v599
      %vm613 = vcmp.lt.f32.partialorder %v612, 0.0004427343
      %v614 = vsel %vm613, %v611, %v608
      %v615 = vadd.f32 %v601, 1.0
      %v616 = vlog2.pop %v615
      %v617 = vmul.f32 %v616, 0.6931472
      %v618 = vmul.f32 -0.5, %v601
      %v619 = vadd.f32 %v618, 1.0
      %v620 = vmul.f32 %v619, %v601
      %v621 = vand.u32 2147483647, %v601
      %vm622 = vcmp.lt.f32.partialorder %v621, 0.0004427343
      %v623 = vsel %vm622, %v620, %v617
      %v624 = vadd.f32 %v603, 1.0
      %v625 = vlog2.pop %v624
      %v626 = vmul.f32 %v625, 0.6931472
      %v627 = vmul.f32 -0.5, %v603
      %v628 = vadd.f32 %v627, 1.0
      %v629 = vmul.f32 %v628, %v603
      %v630 = vand.u32 2147483647, %v603
      %vm631 = vcmp.lt.f32.partialorder %v630, 0.0004427343
      %v632 = vsel %vm631, %v629, %v626
      %v633 = vadd.f32 %v605, 1.0
      %v634 = vlog2.pop %v633
      %v635 = vmul.f32 %v634, 0.6931472
      %v636 = vmul.f32 -0.5, %v605
      %v637 = vadd.f32 %v636, 1.0
      %v638 = vmul.f32 %v637, %v605
      %v639 = vand.u32 2147483647, %v605
      %vm640 = vcmp.lt.f32.partialorder %v639, 0.0004427343
      %v641 = vsel %vm640, %v638, %v635
      %v642 = vadd.f32 %v578, %v614
      %v643 = vadd.f32 %v579, %v623
      %v644 = vadd.f32 %v580, %v632
      %v645 = vadd.f32 %v581, %v641
      %v646 = vsel %vm582, %v586, %v642
      %v647 = vsel %vm583, %v587, %v643
      %v648 = vsel %vm584, %v588, %v644
      %v649 = vsel %vm585, %v589, %v645
      %v650 = vmax.f32 %v646, 1e-05
      %v651 = vmax.f32 %v647, 1e-05
      %v652 = vmax.f32 %v648, 1e-05
      %v653 = vmax.f32 %v649, 1e-05
      %654 = vst [vmem:[#allocation11] sm:$0xff] %v650
      %655 = vst [vmem:[#allocation11 + $0x8] sm:$0xff] %v651
      %656 = vst [vmem:[#allocation11 + $0x10] sm:$0xff] %v652
      %657 = vst [vmem:[#allocation11 + $0x18] sm:$0xff] %v653
    $region53: #{tpu_custom_call.1} parent=1 // pred_fallthru
      _
    // Predicated region
    $region54: #{tpu_custom_call.1} parent=1 // pred_check
      _
    $region55: #{tpu_custom_call.1} parent=1 // pred_check_branch
      %659 = sbr.rel (0) target = $region57
    $region56: #{tpu_custom_call.1} parent=1 // pred_region
      %661 = vsyncadd [#allocation5], 0
      %s662 = sshll.u32 [#allocation11], 4
      %s663 = int_to_ptr.vmem [resolvable:$true] %s662
      %s664 = sshll.u32 %s7, 4
      %s665 = int_to_ptr.hbm [resolvable:$true] %s664
      %670 = dma.vmem_to_hbm [thread:$0]  %s663, 512, %s665, [#allocation5], 128, 128, 8
    $region57: #{tpu_custom_call.1} parent=1 // pred_fallthru
      _
    // Predicated region
    $region58: #{tpu_custom_call.1} parent=1 // pred_check
      _
    $region59: #{tpu_custom_call.1} parent=1 // pred_check_branch
      %672 = sbr.rel (0) target = $region61
    $region60: #{tpu_custom_call.1} parent=1 // pred_region
      %674 = dma.done [#allocation5], 512
    $region61: #{tpu_custom_call.1} parent=1 // pred_fallthru
      _
    %675 = vsyncpa [#allocation4], 1
    %676 = vsyncpa [#allocation7], 1
    %677 = vsyncpa [#allocation10], 1
    %678 = vsyncpa [#allocation5], 1

</llo_original>
